<compile_context>
chip_gen: v6e
topology: v6e:2x2x1
jax: 0.10.0
libtpu: 0.0.40
codegen_flags: <defaults>
</compile_context>

<pallas_src>
import functools

import jax
import jax.numpy as jnp
from jax import lax
from jax.experimental import pallas as pl
from jax.experimental.pallas import tpu as pltpu

_LANE = 128
_VMEM_LIMIT = 64 * 1024 * 1024


# ----------------------------------------------------------------------------
# small padding helpers (glue)
# ----------------------------------------------------------------------------
def _round_up(x, m):
    return (x + m - 1) // m * m


def _pad_rows(a, rows):
    return jnp.pad(a, ((0, rows - a.shape[0]), (0, 0)))


def _pad2(a, rows, cols):
    return jnp.pad(a, ((0, rows - a.shape[0]), (0, cols - a.shape[1])))


def _pad1(a, n):
    return jnp.pad(a, (0, n - a.shape[0]))


def _block_rows_for(n, preferred):
    """Row-block size: `preferred` for large n, else n rounded up to 8."""
    if n >= preferred:
        return preferred
    return _round_up(n, 8)


# ----------------------------------------------------------------------------
# Tiled linear kernel:  out = act(x @ W + b)
# ----------------------------------------------------------------------------
def _linear_kernel(x_ref, w_ref, b_ref, o_ref, *, relu):
    y = jnp.dot(x_ref[...], w_ref[...], preferred_element_type=jnp.float32)
    y = y + b_ref[...]
    if relu:
        y = jnp.maximum(y, 0.0)
    o_ref[...] = y.astype(o_ref.dtype)


def pallas_linear(x, w, b, relu=False, block_rows=512):
    """act(x @ w + b); row-tiled, software-pipelined, megacore-parallel."""
    M, K = x.shape
    _, N = w.shape
    tm = _block_rows_for(M, block_rows)
    mp = _round_up(M, tm)
    xp = _pad_rows(x, mp)
    out = pl.pallas_call(
        functools.partial(_linear_kernel, relu=relu),
        grid=(mp // tm,),
        in_specs=[
            pl.BlockSpec((tm, K), lambda i: (i, 0)),   # row tile of x
            pl.BlockSpec((K, N), lambda i: (0, 0)),    # weights, resident
            pl.BlockSpec((1, N), lambda i: (0, 0)),    # bias, resident
        ],
        out_specs=pl.BlockSpec((tm, N), lambda i: (i, 0)),
        out_shape=jax.ShapeDtypeStruct((mp, N), jnp.float32),
        compiler_params=pltpu.CompilerParams(
            dimension_semantics=("parallel",),
            vmem_limit_bytes=_VMEM_LIMIT),
    )(xp, w, b.reshape(1, N))
    return out[:M]


# ----------------------------------------------------------------------------
# CSR segment-mean kernel (used once, to pre-aggregate encoded edge_attr):
#   out[t] = (1/deg[t]) * sum_{p in [rowptr[t], rowptr[t+1])} vals[gidx[p]]
# ----------------------------------------------------------------------------
def _segment_mean_kernel(rowptr_ref, gidx_ref,          # SMEM
                         vals_ref, invdeg_ref,          # VMEM (vals resident)
                         o_ref,                         # VMEM output block
                         *, block_rows):
    base = pl.multiple_of(pl.program_id(0) * block_rows, block_rows)
    hp = vals_ref.shape[1]

    def node_body(r, carry):
        row = base + r
        start = rowptr_ref[row]
        stop = rowptr_ref[row + 1]

        def edge_body(e, acc):
            return acc + vals_ref[pl.ds(gidx_ref[e], 1), :]

        acc = lax.fori_loop(start, stop, edge_body,
                            jnp.zeros((1, hp), jnp.float32))
        o_ref[pl.ds(r, 1), :] = acc * invdeg_ref[pl.ds(r, 1), :]
        return carry

    lax.fori_loop(0, block_rows, node_body, 0)


def pallas_segment_mean(vals, gidx, rowptr, inv_deg, block_rows):
    np_ = inv_deg.shape[0]
    ep, hp = vals.shape
    smem = functools.partial(pl.BlockSpec, memory_space=pltpu.MemorySpace.SMEM)
    return pl.pallas_call(
        functools.partial(_segment_mean_kernel, block_rows=block_rows),
        grid=(np_ // block_rows,),
        in_specs=[
            smem(),                                           # rowptr
            smem(),                                           # gather indices
            pl.BlockSpec((ep, hp), lambda i: (0, 0)),         # values, resident
            pl.BlockSpec((block_rows, 1), lambda i: (i, 0)),  # 1/deg block
        ],
        out_specs=pl.BlockSpec((block_rows, hp), lambda i: (i, 0)),
        out_shape=jax.ShapeDtypeStruct((np_, hp), jnp.float32),
        compiler_params=pltpu.CompilerParams(
            dimension_semantics=("parallel",),
            vmem_limit_bytes=_VMEM_LIMIT),
    )(rowptr, gidx, vals, inv_deg)


# ----------------------------------------------------------------------------
# Fused GINConv layer kernel (grid over node-row blocks):
#   agg[i]  = (1/deg_i) * sum_{e: tgt(e)=i} h[src(e)]     (CSR gather-sum)
#   hpre    = (1 + eps) * h + agg + ea_mean
#   out     = relu( relu(hpre @ W1 + b1) @ W2 + b2 )       (mlp + outer F.relu)
# ----------------------------------------------------------------------------
def _gin_conv_kernel(rowptr_ref, src_ref, eps_ref,       # SMEM
                     h_ref, eam_ref, invdeg_ref,         # VMEM inputs
                     w1_ref, b1_ref, w2_ref, b2_ref,     # VMEM weights
                     o_ref,                              # VMEM output block
                     agg_ref,                            # VMEM scratch
                     *, block_rows):
    base = pl.multiple_of(pl.program_id(0) * block_rows, block_rows)
    hp = h_ref.shape[1]

    # --- sorted/segmented gather-sum: one write per node, no per-edge RMW ----
    def node_body(r, carry):
        row = base + r
        start = rowptr_ref[row]
        stop = rowptr_ref[row + 1]

        def edge_body(e, acc):
            return acc + h_ref[pl.ds(src_ref[e], 1), :]

        agg_ref[pl.ds(r, 1), :] = lax.fori_loop(
            start, stop, edge_body, jnp.zeros((1, hp), jnp.float32))
        return carry

    lax.fori_loop(0, block_rows, node_body, 0)

    # --- combine + fused row-tiled GIN MLP ------------------------------------
    eps = eps_ref[0]
    h_blk = h_ref[pl.ds(base, block_rows), :]
    hpre = (1.0 + eps) * h_blk + agg_ref[...] * invdeg_ref[...] + eam_ref[...]

    hmid = jnp.dot(hpre, w1_ref[...], preferred_element_type=jnp.float32)
    hmid = jnp.maximum(hmid + b1_ref[...], 0.0)
    hout = jnp.dot(hmid, w2_ref[...], preferred_element_type=jnp.float32)
    hout = jnp.maximum(hout + b2_ref[...], 0.0)          # mlp Lin2 + outer relu
    o_ref[...] = hout.astype(o_ref.dtype)


def pallas_gin_conv(h, ea_mean, src_sorted, rowptr, inv_deg, eps,
                    w1, b1, w2, b2, block_rows):
    np_, hp = h.shape
    h2p = w1.shape[1]
    smem = functools.partial(pl.BlockSpec, memory_space=pltpu.MemorySpace.SMEM)
    return pl.pallas_call(
        functools.partial(_gin_conv_kernel, block_rows=block_rows),
        grid=(np_ // block_rows,),
        in_specs=[
            smem(),                                            # rowptr (CSR)
            smem(),                                            # sorted src ids
            smem(),                                            # eps scalar
            pl.BlockSpec((np_, hp), lambda i: (0, 0)),         # h (resident, gathered)
            pl.BlockSpec((block_rows, hp), lambda i: (i, 0)),  # ea_mean block
            pl.BlockSpec((block_rows, 1), lambda i: (i, 0)),   # 1/deg block
            pl.BlockSpec((hp, h2p), lambda i: (0, 0)),         # W1
            pl.BlockSpec((1, h2p), lambda i: (0, 0)),          # b1
            pl.BlockSpec((h2p, hp), lambda i: (0, 0)),         # W2
            pl.BlockSpec((1, hp), lambda i: (0, 0)),           # b2
        ],
        out_specs=pl.BlockSpec((block_rows, hp), lambda i: (i, 0)),
        out_shape=jax.ShapeDtypeStruct((np_, hp), jnp.float32),
        scratch_shapes=[pltpu.VMEM((block_rows, hp), jnp.float32)],
        compiler_params=pltpu.CompilerParams(
            dimension_semantics=("parallel",),
            vmem_limit_bytes=_VMEM_LIMIT),
    )(rowptr, src_sorted, eps, h, ea_mean, inv_deg,
      w1, b1.reshape(1, h2p), w2, b2.reshape(1, hp))


# ----------------------------------------------------------------------------
# Parameter init (mimics torch.nn.Linear default U(-1/sqrt(k), 1/sqrt(k)))
# ----------------------------------------------------------------------------
def _init_linear(key, fan_in, fan_out):
    kw, kb = jax.random.split(key)
    bound = 1.0 / jnp.sqrt(jnp.float32(fan_in))
    w = jax.random.uniform(kw, (fan_in, fan_out), jnp.float32, -bound, bound)
    b = jax.random.uniform(kb, (fan_out,), jnp.float32, -bound, bound)
    return w, b


def init_gin_params(key, in_node, in_edge, hidden, out, num_layers):
    keys = jax.random.split(key, 3 + 2 * num_layers)
    node_w, node_b = _init_linear(keys[0], in_node, hidden)
    edge_w, edge_b = _init_linear(keys[1], in_edge, hidden)
    convs = []
    for l in range(num_layers):
        w1, b1 = _init_linear(keys[2 + 2 * l], hidden, 2 * hidden)
        w2, b2 = _init_linear(keys[3 + 2 * l], 2 * hidden, hidden)
        convs.append(dict(w1=w1, b1=b1, w2=w2, b2=b2,
                          eps=jnp.zeros((1,), jnp.float32)))
    lin_w, lin_b = _init_linear(keys[2 + 2 * num_layers], hidden, out)
    return dict(node_enc=(node_w, node_b), edge_enc=(edge_w, edge_b),
                convs=convs, lin=(lin_w, lin_b))


# ----------------------------------------------------------------------------
# Forward pass (Pallas)
# ----------------------------------------------------------------------------
def gin_forward(params, x, edge_index, edge_attr):
    n_real = x.shape[0]
    e_cnt = edge_index.shape[1]
    hidden = params["node_enc"][0].shape[1]
    out_c = params["lin"][0].shape[1]

    hp = _round_up(hidden, _LANE)            # lane-dense hidden width
    h2p = _round_up(2 * hidden, _LANE)
    outp = _round_up(out_c, _LANE)
    tn = _block_rows_for(n_real, 128)        # node-row block for the conv grid
    np_ = _round_up(n_real, tn)
    e_pad = _round_up(e_cnt, 8)

    src = edge_index[0].astype(jnp.int32)
    tgt = edge_index[1].astype(jnp.int32)

    # --- static graph preprocessing: sort-by-target CSR (JAX glue, once) -----
    order = jnp.argsort(tgt).astype(jnp.int32)     # edge permutation, grouped by tgt
    src_sorted = src[order]
    deg = jax.ops.segment_sum(jnp.ones((e_cnt,), jnp.int32), tgt,
                              num_segments=np_)
    rowptr = jnp.concatenate([jnp.zeros((1,), jnp.int32),
                              jnp.cumsum(deg).astype(jnp.int32)])
    inv_deg = (1.0 / jnp.maximum(deg.astype(jnp.float32), 1.0)).reshape(np_, 1)

    # pad parameters once to lane-dense channel widths (zeros keep semantics)
    node_w, node_b = params["node_enc"]
    edge_w, edge_b = params["edge_enc"]
    lin_w, lin_b = params["lin"]
    node_w, node_b = _pad2(node_w, node_w.shape[0], hp), _pad1(node_b, hp)
    edge_w, edge_b = _pad2(edge_w, edge_w.shape[0], hp), _pad1(edge_b, hp)
    lin_w, lin_b = _pad2(lin_w, hp, outp), _pad1(lin_b, outp)

    # encoders (row-tiled, pipelined linears)
    h = pallas_linear(_pad_rows(x, np_), node_w, node_b)            # [np_, hp]
    ea = _pad_rows(pallas_linear(edge_attr, edge_w, edge_b), e_pad)  # [e_pad, hp]

    # edge_attr mean per target node: layer-invariant, computed ONCE
    ea_mean = pallas_segment_mean(ea, order, rowptr, inv_deg, tn)    # [np_, hp]

    for layer in params["convs"]:
        w1 = _pad2(layer["w1"], hp, h2p)
        b1 = _pad1(layer["b1"], h2p)
        w2 = _pad2(layer["w2"], h2p, hp)
        b2 = _pad1(layer["b2"], hp)
        # fused: CSR segmented mean aggregation + (1+eps)*h + MLP + outer ReLU
        h = pallas_gin_conv(h, ea_mean, src_sorted, rowptr, inv_deg,
                            layer["eps"], w1, b1, w2, b2, tn)
        # F.dropout(p, training=False) == identity (inference mode)

    out = pallas_linear(h, lin_w, lin_b)                             # [np_, outp]
    return out[:n_real, :out_c]


# ----------------------------------------------------------------------------
# Pure-JAX reference for verification (exact f32 semantics)
# ----------------------------------------------------------------------------
def gin_forward_ref(params, x, edge_index, edge_attr):
    n = x.shape[0]
    src, tgt = edge_index[0], edge_index[1]
    hi = jax.lax.Precision.HIGHEST

    def lin(v, w, b, relu=False):
        y = jnp.dot(v, w, precision=hi) + b
        return jnp.maximum(y, 0.0) if relu else y

    h = lin(x, *params["node_enc"])
    ea = lin(edge_attr, *params["edge_enc"])
    for layer in params["convs"]:
        msgs = h[src] + ea
        agg_sum = jax.ops.segment_sum(msgs, tgt, num_segments=n)
        deg = jax.ops.segment_sum(jnp.ones((edge_index.shape[1],), jnp.float32),
                                  tgt, num_segments=n)
        agg = agg_sum * (1.0 / jnp.maximum(deg, 1.0))[:, None]
        hpre = (1.0 + layer["eps"][0]) * h + agg
        hmid = lin(hpre, layer["w1"], layer["b1"], relu=True)
        h = jnp.maximum(lin(hmid, layer["w2"], layer["b2"]), 0.0)
    return lin(h, *params["lin"])


# ----------------------------------------------------------------------------
if __name__ == "__main__":
    num_nodes, num_edges = 16, 48
    in_node_channels, in_edge_channels = 8, 8
    hidden_channels, out_channels = 32, 4
    num_layers = 2                       # dropout inactive at inference

    key = jax.random.PRNGKey(0)
    k_x, k_ea, k_src, k_tgt, k_params = jax.random.split(key, 5)

    x = jax.random.normal(k_x, (num_nodes, in_node_channels), jnp.float32)
    edge_attr = jax.random.normal(k_ea, (num_edges, in_edge_channels), jnp.float32)
    edge_index = jnp.stack(
        [jax.random.randint(k_src, (num_edges,), 0, num_nodes, jnp.int32),
         jax.random.randint(k_tgt, (num_edges,), 0, num_nodes, jnp.int32)],
        axis=0,
    )

    params = init_gin_params(k_params, in_node_channels, in_edge_channels,
                             hidden_channels, out_channels, num_layers)

    out = jax.block_until_ready(gin_forward(params, x, edge_index, edge_attr))
    ref = gin_forward_ref(params, x, edge_index, edge_attr)

    assert out.shape == (num_nodes, out_channels)
    err = float(jnp.max(jnp.abs(out - ref)))
    # default (single-pass bf16) MXU precision -> bf16-class tolerance
    assert jnp.allclose(out, ref, atol=3e-2, rtol=3e-2), f"mismatch, max err {err}"

    print("KERNEL_OK")
</pallas_src>

<mosaic_0001>
module attributes {stable_mosaic.version = 11 : i64} {
  func.func @_linear_kernel(%arg0: i32, %arg1: memref<16x8xf32, #tpu.memory_space<vmem>>, %arg2: memref<8x128xf32, #tpu.memory_space<vmem>>, %arg3: memref<1x128xf32, #tpu.memory_space<vmem>>, %arg4: memref<16x128xf32, #tpu.memory_space<vmem>>) attributes {dimension_semantics = [#tpu.dimension_semantics<parallel>], iteration_bounds = array<i64: 1>, scalar_prefetch = 0 : i64, scratch_operands = 0 : i64, tpu.core_type = #tpu.core_type<tc>, window_params = [{transform_indices = @transform_0, window_bounds = array<i64: 16, 8>}, {pipeline_mode = #tpu.pipeline_mode<synchronous>, transform_indices = @transform_1, window_bounds = array<i64: 8, 128>}, {pipeline_mode = #tpu.pipeline_mode<synchronous>, transform_indices = @transform_2, window_bounds = array<i64: 1, 128>}, {transform_indices = @transform_3, window_bounds = array<i64: 16, 128>}]} {
    %c0 = arith.constant 0 : index
    %c0_0 = arith.constant 0 : index
    %0 = vector.load %arg1[%c0, %c0_0] : memref<16x8xf32, #tpu.memory_space<vmem>>, vector<16x8xf32>
    %c0_1 = arith.constant 0 : index
    %c0_2 = arith.constant 0 : index
    %1 = vector.load %arg2[%c0_1, %c0_2] : memref<8x128xf32, #tpu.memory_space<vmem>>, vector<8x128xf32>
    %cst = arith.constant dense<0.000000e+00> : vector<16x128xf32>
    %2 = tpu.matmul %0, %1, %cst {dimension_numbers = #tpu.dot_dimension_numbers<[1], [0], [0], [1], [0, 0, 1, 1], [], []>} : vector<16x8xf32>, vector<8x128xf32>, vector<16x128xf32> -> vector<16x128xf32>
    %c0_3 = arith.constant 0 : index
    %c0_4 = arith.constant 0 : index
    %3 = vector.load %arg3[%c0_3, %c0_4] : memref<1x128xf32, #tpu.memory_space<vmem>>, vector<1x128xf32>
    %4 = vector.broadcast %3 : vector<1x128xf32> to vector<16x128xf32>
    %5 = arith.addf %2, %4 : vector<16x128xf32>
    %c0_5 = arith.constant 0 : index
    %c0_6 = arith.constant 0 : index
    %6 = vector.load %arg4[%c0_5, %c0_6] : memref<16x128xf32, #tpu.memory_space<vmem>>, vector<16x128xf32>
    tpu.vector_store %arg4[%c0_5, %c0_6], %5 {strides = array<i32>} : memref<16x128xf32, #tpu.memory_space<vmem>>, vector<16x128xf32>,
    return
  }
  func.func @transform_0(%arg0: i32) -> (i32, i32) {
    %c0_i32 = arith.constant 0 : i32
    %c0_i32_0 = arith.constant 0 : i32
    return %arg0, %c0_i32 : i32, i32
  }
  func.func @transform_1(%arg0: i32) -> (i32, i32) {
    %c0_i32 = arith.constant 0 : i32
    %c0_i32_0 = arith.constant 0 : i32
    %c0_i32_1 = arith.constant 0 : i32
    return %c0_i32, %c0_i32_0 : i32, i32
  }
  func.func @transform_2(%arg0: i32) -> (i32, i32) {
    %c0_i32 = arith.constant 0 : i32
    %c0_i32_0 = arith.constant 0 : i32
    %c0_i32_1 = arith.constant 0 : i32
    return %c0_i32, %c0_i32_0 : i32, i32
  }
  func.func @transform_3(%arg0: i32) -> (i32, i32) {
    %c0_i32 = arith.constant 0 : i32
    %c0_i32_0 = arith.constant 0 : i32
    return %arg0, %c0_i32 : i32, i32
  }
}

</mosaic_0001>

<llo_original>
// kernel: tpu_custom_call.1
$region0: #{tpu_custom_call.1}
  #allocation0 [shape = 'u32[]', space=smem, size = 0x4, offset = 0x4, fixed_abs, tag = 'smem constant byte address 0x4 - core index']
  #allocation1 [shape = 'u32[144,128]{1,0:T(1,128)}', space=vmem, size = 0x12000, scoped, tag = 'internal scratch']
  %s0 = inlined_call_operand.vmem [shape: f32[16,8], index: 0, kind: input, shape index: {}]
  %s1 = inlined_call_operand.vmem [shape: f32[8,128], index: 1, kind: input, shape index: {}]
  %s2 = inlined_call_operand.vmem [shape: f32[1,128], index: 2, kind: input, shape index: {}]
  %s3 = inlined_call_operand.hbm [shape: f32[16,128], index: 3, kind: output, shape index: {}]
  %s4 = sld [smem:[#allocation0]]
  $region22: #{tpu_custom_call.1} parent=0
    _
  %s6 = ssub.s32 1, %s4
  %s7 = scalar_select 0, %s6, %s4
  $region1: #{tpu_custom_call.1} parent=0
    #allocation2 [shape = 'u8[8192]{0}', space=vmem, size = 0x2000, scoped, tag = 'output window, operand 0, single buffered']
    #allocation3 [shape = 's32[1]{0}', space=sflag, size = 0x4, scoped, tag = 'scoped memory for tpu_custom_call.1']
    %8 = vsyncpa [#allocation3], 0
    // Predicated region
    $region2: #{tpu_custom_call.1} parent=1 // pred_check
      _
    $region3: #{tpu_custom_call.1} parent=1 // pred_check_branch
      %10 = sbr.rel (0) target = $region5
    $region4: #{tpu_custom_call.1} parent=1 // pred_region
      _
    $region5: #{tpu_custom_call.1} parent=1 // pred_fallthru
      _
    // Predicated region
    $region6: #{tpu_custom_call.1} parent=1 // pred_check
      _
    $region7: #{tpu_custom_call.1} parent=1 // pred_check_branch
      %12 = sbr.rel (0) target = $region9
    $region8: #{tpu_custom_call.1} parent=1 // pred_region
      _
    $region9: #{tpu_custom_call.1} parent=1 // pred_fallthru
      _
    // Predicated region
    $region10: #{tpu_custom_call.1} parent=1 // pred_check
      _
    $region11: #{tpu_custom_call.1} parent=1 // pred_check_branch
      %14 = sbr.rel (0) target = $region13
    $region12: #{tpu_custom_call.1} parent=1 // pred_region
      _
    $region13: #{tpu_custom_call.1} parent=1 // pred_fallthru
      _
    %v15 = vld [vmem:[%s0] sm:$0xff]
    %v16 = vld [vmem:[%s0 + $0x8] sm:$0xff]
    %v17 = vld [vmem:[%s1] sm:$0xff]
    %v18 = vld [vmem:[%s2] sm:$0x1]
    %v20 = vlaneseq
    %v21 = vshrl.u32 %v20, 7
    %v22 = vsub.s32 0, %v21
    %v23 = vrot.slane %v18, %v22
    %vm25 = vcmask 64512
    %v27 = vsel %vm25, %v15, 0
    %v30 = vsel %vm25, %v16, 0
    %32 = vmatprep.subr.mxu0 0.0
    %33 = vmatpush1.msra.mxu0 0.0
    %34 = vmatprep.subr.mxu0 0.0
    %35 = vmatpush1.msra.mxu0 0.0
    %36 = vmatprep.subr.mxu0 0.0
    %37 = vmatpush1.msra.mxu0 0.0
    %38 = vmatprep.subr.mxu0 0.0
    %39 = vmatpush1.msra.mxu0 0.0
    %40 = vmatprep.subr.mxu0 0.0
    %41 = vmatpush1.msra.mxu0 0.0
    %42 = vmatprep.subr.mxu0 0.0
    %43 = vmatpush1.msra.mxu0 0.0
    %44 = vmatprep.subr.mxu0 0.0
    %45 = vmatpush1.msra.mxu0 0.0
    %46 = vmatprep.subr.mxu0 0.0
    %47 = vmatpush1.msra.mxu0 0.0
    %48 = vmatprep.subr.mxu0 0.0
    %49 = vmatpush1.msra.mxu0 0.0
    %50 = vmatprep.subr.mxu0 0.0
    %51 = vmatpush1.msra.mxu0 0.0
    %52 = vmatprep.subr.mxu0 0.0
    %53 = vmatpush1.msra.mxu0 0.0
    %54 = vmatprep.subr.mxu0 0.0
    %55 = vmatpush1.msra.mxu0 0.0
    %56 = vmatprep.subr.mxu0 0.0
    %57 = vmatpush1.msra.mxu0 0.0
    %58 = vmatprep.subr.mxu0 0.0
    %59 = vmatpush1.msra.mxu0 0.0
    %60 = vmatprep.subr.mxu0 0.0
    %61 = vmatpush1.msra.mxu0 0.0
    %62 = vmatprep.subr.mxu0 0.0
    %63 = vmatpush1.msra.mxu0 %v17
    %64 = vmatprep.subr.mxu0 0.0
    %65 = vmatpush2.msra.mxu0 0.0
    %66 = vmatprep.subr.mxu0 0.0
    %67 = vmatpush2.msra.mxu0 0.0
    %68 = vmatprep.subr.mxu0 0.0
    %69 = vmatpush2.msra.mxu0 0.0
    %70 = vmatprep.subr.mxu0 0.0
    %71 = vmatpush2.msra.mxu0 0.0
    %72 = vmatprep.subr.mxu0 0.0
    %73 = vmatpush2.msra.mxu0 0.0
    %74 = vmatprep.subr.mxu0 0.0
    %75 = vmatpush2.msra.mxu0 0.0
    %76 = vmatprep.subr.mxu0 0.0
    %77 = vmatpush2.msra.mxu0 0.0
    %78 = vmatprep.subr.mxu0 0.0
    %79 = vmatpush2.msra.mxu0 0.0
    %80 = vmatprep.subr.mxu0 0.0
    %81 = vmatpush2.msra.mxu0 0.0
    %82 = vmatprep.subr.mxu0 0.0
    %83 = vmatpush2.msra.mxu0 0.0
    %84 = vmatprep.subr.mxu0 0.0
    %85 = vmatpush2.msra.mxu0 0.0
    %86 = vmatprep.subr.mxu0 0.0
    %87 = vmatpush2.msra.mxu0 0.0
    %88 = vmatprep.subr.mxu0 0.0
    %89 = vmatpush2.msra.mxu0 0.0
    %90 = vmatprep.subr.mxu0 0.0
    %91 = vmatpush2.msra.mxu0 0.0
    %92 = vmatprep.subr.mxu0 0.0
    %93 = vmatpush2.msra.mxu0 0.0
    %94 = vmatprep.subr.mxu0 0.0
    %95 = vmatpush2.msra.mxu0 0.0
    %96 = vmatprep.mubr.f32.mxu0 0.0
    %97 = vmatmul.mubr.f32.gmra.mxu0 %v27
    %v98 = vpop.f32.mrf.mxu0
    %v99 = vadd.f32 %v23, %v98
    %v100 = vpop.f32.mrf.mxu0
    %101 = vmatprep.mubr.f32.mxu0 0.0
    %102 = vmatmul.mubr.f32.gmra.mxu0 %v30
    %v103 = vpop.f32.mrf.mxu0
    %v104 = vadd.f32 %v23, %v103
    %v105 = vpop.f32.mrf.mxu0
    %106 = vdwg.mxu0
    %107 = vst [vmem:[#allocation2] sm:$0xff] %v99
    %108 = vst [vmem:[#allocation2 + $0x8] sm:$0xff] %v104
    // Predicated region
    $region14: #{tpu_custom_call.1} parent=1 // pred_check
      _
    $region15: #{tpu_custom_call.1} parent=1 // pred_check_branch
      %110 = sbr.rel (0) target = $region17
    $region16: #{tpu_custom_call.1} parent=1 // pred_region
      %s112 = ssub.s32 256, 256
      %113 = vsyncadd [#allocation3], %s112
      %s114 = sshll.u32 [#allocation2], 4
      %s115 = int_to_ptr.vmem [resolvable:$true] %s114
      %120 = dma.vmem_to_hbm [thread:$0]  %s115, 256, %s3, [#allocation3], 128, 128, 8
    $region17: #{tpu_custom_call.1} parent=1 // pred_fallthru
      _
    // Predicated region
    $region18: #{tpu_custom_call.1} parent=1 // pred_check
      _
    $region19: #{tpu_custom_call.1} parent=1 // pred_check_branch
      %122 = sbr.rel (0) target = $region21
    $region20: #{tpu_custom_call.1} parent=1 // pred_region
      %123 = dma.done [#allocation3], 256
    $region21: #{tpu_custom_call.1} parent=1 // pred_fallthru
      _
    %124 = vsyncpa [#allocation3], 1

</llo_original>
